<compile_context>
chip_gen: v5e
topology: v5e:2x2
jax: 0.10.0
libtpu: 0.0.40
codegen_flags: <defaults>
</compile_context>

<pallas_src>
import functools
import math

import jax
import jax.numpy as jnp
from jax.experimental import pallas as pl
from jax.experimental.pallas import tpu as pltpu


def _perception_kernel(x_ref, w_ref, o_ref):
    """o = x @ W, computed as an unrolled VPU broadcast-multiply-accumulate.

    x_ref: (TB, Keff)  grouped input rows (Keff = 2k, lane-padded in VMEM)
    w_ref: (Keff, L)   block-diagonal weights (L = k*out_dim, lane-dense)
    o_ref: (TB, L)     lane-dense output tile
    """
    x = x_ref[...].astype(jnp.float32)   # f32 compute (v5e has no bf16 VPU)
    w = w_ref[...].astype(jnp.float32)
    keff = w_ref.shape[0]
    acc = x[:, 0:1] * w[0:1, :]
    for j in range(1, keff):             # Keff <= 32 by construction
        acc = acc + x[:, j:j + 1] * w[j:j + 1, :]
    o_ref[...] = acc.astype(o_ref.dtype)


def _pick_group(batch, out_dim):
    """Smallest k with (k*out_dim) % 128 == 0 for a lane-dense output view."""
    if out_dim % 128 == 0:
        return 1
    k = 128 // math.gcd(out_dim, 128)
    # Need B % k == 0 for the free wrapper-side reshape; keep the unrolled
    # inner loop / block-diag weight small.  Otherwise fall back to k=1
    # (correct, just masked partial stores).
    if k <= 16 and batch % k == 0:
        return k
    return 1


def _pick_row_tile(n_rows, lane_width):
    """VMEM- and pipeline-aware batch-row tile for the grouped view."""
    elem = 4  # f32
    budget = 16 * 1024 * 1024  # ~half of the 32 MiB scoped VMEM we request
    # Double-buffered output tile + double-buffered x tile (the narrow 2k-lane
    # block pads to 128 lanes in VMEM) + one set of f32 compute temporaries.
    per_row = 3 * elem * lane_width + 3 * elem * 128
    cap_vmem = max(8, budget // per_row)
    # Keep >= ~8 grid steps on large inputs (v7x megacore + DMA pipelining),
    # but never shrink tiles below 512 rows (per-step overhead amortization).
    cap_steps = max(512, pl.cdiv(n_rows, 8))
    cap = min(cap_vmem, cap_steps, 4096)
    if n_rows <= cap:
        return n_rows
    tb = 8
    while tb * 2 <= cap:
        tb *= 2
    return tb


@functools.partial(jax.jit, static_argnames=("is_fc",))
def perception_forward(x, w_L, w_N, is_fc=False):
    """Pallas implementation of Perception.forward.

    x    : (B, 2) float32
    w_L  : (1, H2) float32   (H2 = hidden_size//2 if not is_fc else hidden_size)
    w_N  : (1, H2) float32
    """
    B = x.shape[0]
    H2 = w_L.shape[1]
    out_dim = H2 if is_fc else 2 * H2

    # Per-row weight (2, out_dim): fc -> [w_L ; w_N], cat -> [[w_L|0],[0|w_N]].
    if is_fc:
        w_row = jnp.concatenate([w_L, w_N], axis=0)
    else:
        z = jnp.zeros_like(w_L)
        w_row = jnp.concatenate(
            [jnp.concatenate([w_L, z], axis=1),
             jnp.concatenate([z, w_N], axis=1)], axis=0)

    # Group k batch rows per output row so the store lane-width is a multiple
    # of 128 (lane-dense stores); weights become block-diagonal.
    k = _pick_group(B, out_dim)
    if k > 1:
        w_eff = jnp.kron(jnp.eye(k, dtype=w_row.dtype), w_row)  # (2k, k*out_dim)
        x_eff = x.reshape(B // k, 2 * k)                         # free reshape
    else:
        w_eff = w_row                                            # (2, out_dim)
        x_eff = x                                                # (B, 2)

    n_rows, keff = x_eff.shape
    lane_w = k * out_dim
    TB = _pick_row_tile(n_rows, lane_w)
    grid = (pl.cdiv(n_rows, TB),)

    out_g = pl.pallas_call(
        _perception_kernel,
        out_shape=jax.ShapeDtypeStruct((n_rows, lane_w), x.dtype),
        grid=grid,
        in_specs=[
            pl.BlockSpec((TB, keff), lambda i: (i, 0)),
            pl.BlockSpec((keff, lane_w), lambda i: (0, 0)),  # grid-invariant
        ],
        out_specs=pl.BlockSpec((TB, lane_w), lambda i: (i, 0)),
        compiler_params=pltpu.CompilerParams(
            dimension_semantics=("parallel",),
            vmem_limit_bytes=32 * 1024 * 1024,
        ),
    )(x_eff, w_eff)

    return out_g.reshape(B, out_dim)


def perception_reference(x, w_L, w_N, is_fc=False):
    """Pure-JAX reference mirroring the PyTorch forward exactly."""
    left = jnp.matmul(x[:, 0:1], w_L)
    right = jnp.matmul(x[:, 1:2], w_N)
    if is_fc:
        return left + right
    return jnp.concatenate([left, right], axis=1)


if __name__ == "__main__":
    key = jax.random.PRNGKey(0)
    w_L_val, w_N_val = 0.5, -0.25

    # --- small shapes (B=8, hidden=32): grouped lane-dense path (k=4) ---
    B, hidden = 8, 32
    H2 = hidden // 2
    x = jax.random.normal(key, (B, 2), dtype=jnp.float32)
    w_L = jnp.full((1, H2), w_L_val, dtype=jnp.float32)
    w_N = jnp.full((1, H2), w_N_val, dtype=jnp.float32)

    out = jax.block_until_ready(perception_forward(x, w_L, w_N, is_fc=False))
    ref = perception_reference(x, w_L, w_N, is_fc=False)
    assert out.shape == (B, hidden), out.shape
    assert jnp.allclose(out, ref, atol=1e-6, rtol=1e-6)

    # --- fc branch (same hidden, grouped path) ---
    w_L_fc = jnp.full((1, hidden), w_L_val, dtype=jnp.float32)
    w_N_fc = jnp.full((1, hidden), w_N_val, dtype=jnp.float32)
    out_fc = jax.block_until_ready(perception_forward(x, w_L_fc, w_N_fc, is_fc=True))
    ref_fc = perception_reference(x, w_L_fc, w_N_fc, is_fc=True)
    assert out_fc.shape == (B, hidden), out_fc.shape
    assert jnp.allclose(out_fc, ref_fc, atol=1e-6, rtol=1e-6)

    # --- out_dim already a multiple of 128: ungrouped (k=1) path ---
    B2, hidden2 = 64, 256
    x2 = jax.random.normal(jax.random.PRNGKey(1), (B2, 2), dtype=jnp.float32)
    w_L2 = jnp.full((1, hidden2 // 2), w_L_val, dtype=jnp.float32)
    w_N2 = jnp.full((1, hidden2 // 2), w_N_val, dtype=jnp.float32)
    out2 = jax.block_until_ready(perception_forward(x2, w_L2, w_N2, is_fc=False))
    ref2 = perception_reference(x2, w_L2, w_N2, is_fc=False)
    assert out2.shape == (B2, hidden2), out2.shape
    assert jnp.allclose(out2, ref2, atol=1e-6, rtol=1e-6)

    # --- larger batch: multi-step "parallel" grid (grouped, TB=512, grid=2) ---
    B3 = 4096
    x3 = jax.random.normal(jax.random.PRNGKey(2), (B3, 2), dtype=jnp.float32)
    out3 = jax.block_until_ready(perception_forward(x3, w_L, w_N, is_fc=False))
    ref3 = perception_reference(x3, w_L, w_N, is_fc=False)
    assert out3.shape == (B3, hidden), out3.shape
    assert jnp.allclose(out3, ref3, atol=1e-6, rtol=1e-6)

    print("KERNEL_OK")
</pallas_src>

<mosaic_0001>
module attributes {stable_mosaic.version = 11 : i64} {
  func.func @_perception_kernel(%arg0: i32, %arg1: memref<2x8xf32, #tpu.memory_space<vmem>>, %arg2: memref<8x128xf32, #tpu.memory_space<vmem>>, %arg3: memref<2x128xf32, #tpu.memory_space<vmem>>) attributes {dimension_semantics = [#tpu.dimension_semantics<parallel>], iteration_bounds = array<i64: 1>, scalar_prefetch = 0 : i64, scratch_operands = 0 : i64, tpu.core_type = #tpu.core_type<tc>, window_params = [{transform_indices = @transform_0, window_bounds = array<i64: 2, 8>}, {pipeline_mode = #tpu.pipeline_mode<synchronous>, transform_indices = @transform_1, window_bounds = array<i64: 8, 128>}, {transform_indices = @transform_2, window_bounds = array<i64: 2, 128>}]} {
    %c0 = arith.constant 0 : index
    %c0_0 = arith.constant 0 : index
    %0 = vector.load %arg1[%c0, %c0_0] : memref<2x8xf32, #tpu.memory_space<vmem>>, vector<2x8xf32>
    %c0_1 = arith.constant 0 : index
    %c0_2 = arith.constant 0 : index
    %1 = vector.load %arg2[%c0_1, %c0_2] : memref<8x128xf32, #tpu.memory_space<vmem>>, vector<8x128xf32>
    %2 = vector.extract_strided_slice %0 {offsets = [0, 0], sizes = [2, 1], strides = [1, 1]} : vector<2x8xf32> to vector<2x1xf32>
    %3 = vector.extract_strided_slice %1 {offsets = [0, 0], sizes = [1, 128], strides = [1, 1]} : vector<8x128xf32> to vector<1x128xf32>
    %4 = vector.broadcast %2 : vector<2x1xf32> to vector<2x128xf32>
    %5 = vector.broadcast %3 : vector<1x128xf32> to vector<2x128xf32>
    %6 = arith.mulf %4, %5 : vector<2x128xf32>
    %7 = vector.extract_strided_slice %0 {offsets = [0, 1], sizes = [2, 1], strides = [1, 1]} : vector<2x8xf32> to vector<2x1xf32>
    %8 = vector.extract_strided_slice %1 {offsets = [1, 0], sizes = [1, 128], strides = [1, 1]} : vector<8x128xf32> to vector<1x128xf32>
    %9 = vector.broadcast %7 : vector<2x1xf32> to vector<2x128xf32>
    %10 = vector.broadcast %8 : vector<1x128xf32> to vector<2x128xf32>
    %11 = arith.mulf %9, %10 : vector<2x128xf32>
    %12 = arith.addf %6, %11 : vector<2x128xf32>
    %13 = vector.extract_strided_slice %0 {offsets = [0, 2], sizes = [2, 1], strides = [1, 1]} : vector<2x8xf32> to vector<2x1xf32>
    %14 = vector.extract_strided_slice %1 {offsets = [2, 0], sizes = [1, 128], strides = [1, 1]} : vector<8x128xf32> to vector<1x128xf32>
    %15 = vector.broadcast %13 : vector<2x1xf32> to vector<2x128xf32>
    %16 = vector.broadcast %14 : vector<1x128xf32> to vector<2x128xf32>
    %17 = arith.mulf %15, %16 : vector<2x128xf32>
    %18 = arith.addf %12, %17 : vector<2x128xf32>
    %19 = vector.extract_strided_slice %0 {offsets = [0, 3], sizes = [2, 1], strides = [1, 1]} : vector<2x8xf32> to vector<2x1xf32>
    %20 = vector.extract_strided_slice %1 {offsets = [3, 0], sizes = [1, 128], strides = [1, 1]} : vector<8x128xf32> to vector<1x128xf32>
    %21 = vector.broadcast %19 : vector<2x1xf32> to vector<2x128xf32>
    %22 = vector.broadcast %20 : vector<1x128xf32> to vector<2x128xf32>
    %23 = arith.mulf %21, %22 : vector<2x128xf32>
    %24 = arith.addf %18, %23 : vector<2x128xf32>
    %25 = vector.extract_strided_slice %0 {offsets = [0, 4], sizes = [2, 1], strides = [1, 1]} : vector<2x8xf32> to vector<2x1xf32>
    %26 = vector.extract_strided_slice %1 {offsets = [4, 0], sizes = [1, 128], strides = [1, 1]} : vector<8x128xf32> to vector<1x128xf32>
    %27 = vector.broadcast %25 : vector<2x1xf32> to vector<2x128xf32>
    %28 = vector.broadcast %26 : vector<1x128xf32> to vector<2x128xf32>
    %29 = arith.mulf %27, %28 : vector<2x128xf32>
    %30 = arith.addf %24, %29 : vector<2x128xf32>
    %31 = vector.extract_strided_slice %0 {offsets = [0, 5], sizes = [2, 1], strides = [1, 1]} : vector<2x8xf32> to vector<2x1xf32>
    %32 = vector.extract_strided_slice %1 {offsets = [5, 0], sizes = [1, 128], strides = [1, 1]} : vector<8x128xf32> to vector<1x128xf32>
    %33 = vector.broadcast %31 : vector<2x1xf32> to vector<2x128xf32>
    %34 = vector.broadcast %32 : vector<1x128xf32> to vector<2x128xf32>
    %35 = arith.mulf %33, %34 : vector<2x128xf32>
    %36 = arith.addf %30, %35 : vector<2x128xf32>
    %37 = vector.extract_strided_slice %0 {offsets = [0, 6], sizes = [2, 1], strides = [1, 1]} : vector<2x8xf32> to vector<2x1xf32>
    %38 = vector.extract_strided_slice %1 {offsets = [6, 0], sizes = [1, 128], strides = [1, 1]} : vector<8x128xf32> to vector<1x128xf32>
    %39 = vector.broadcast %37 : vector<2x1xf32> to vector<2x128xf32>
    %40 = vector.broadcast %38 : vector<1x128xf32> to vector<2x128xf32>
    %41 = arith.mulf %39, %40 : vector<2x128xf32>
    %42 = arith.addf %36, %41 : vector<2x128xf32>
    %43 = vector.extract_strided_slice %0 {offsets = [0, 7], sizes = [2, 1], strides = [1, 1]} : vector<2x8xf32> to vector<2x1xf32>
    %44 = vector.extract_strided_slice %1 {offsets = [7, 0], sizes = [1, 128], strides = [1, 1]} : vector<8x128xf32> to vector<1x128xf32>
    %45 = vector.broadcast %43 : vector<2x1xf32> to vector<2x128xf32>
    %46 = vector.broadcast %44 : vector<1x128xf32> to vector<2x128xf32>
    %47 = arith.mulf %45, %46 : vector<2x128xf32>
    %48 = arith.addf %42, %47 : vector<2x128xf32>
    %c0_3 = arith.constant 0 : index
    %c0_4 = arith.constant 0 : index
    %49 = vector.load %arg3[%c0_3, %c0_4] : memref<2x128xf32, #tpu.memory_space<vmem>>, vector<2x128xf32>
    tpu.vector_store %arg3[%c0_3, %c0_4], %48 {strides = array<i32>} : memref<2x128xf32, #tpu.memory_space<vmem>>, vector<2x128xf32>,
    return
  }
  func.func @transform_0(%arg0: i32) -> (i32, i32) {
    %c0_i32 = arith.constant 0 : i32
    %c0_i32_0 = arith.constant 0 : i32
    return %arg0, %c0_i32 : i32, i32
  }
  func.func @transform_1(%arg0: i32) -> (i32, i32) {
    %c0_i32 = arith.constant 0 : i32
    %c0_i32_0 = arith.constant 0 : i32
    %c0_i32_1 = arith.constant 0 : i32
    return %c0_i32, %c0_i32_0 : i32, i32
  }
  func.func @transform_2(%arg0: i32) -> (i32, i32) {
    %c0_i32 = arith.constant 0 : i32
    %c0_i32_0 = arith.constant 0 : i32
    return %arg0, %c0_i32 : i32, i32
  }
}

</mosaic_0001>

<llo_original>
// kernel: perception_forward.1
$region0: #{perception_forward.1}
  #allocation0 [shape = 'u32[]', space=smem, size = 0x4, offset = 0x4, fixed_abs, tag = 'smem constant byte address 0x4 - core index']
  #allocation1 [shape = 'u32[72,128]{1,0:T(1,128)}', space=vmem, size = 0x9000, scoped, tag = 'internal scratch']
  %s0 = inlined_call_operand.vmem [shape: f32[2,8], index: 0, kind: input, shape index: {}]
  %s1 = inlined_call_operand.vmem [shape: f32[8,128], index: 1, kind: input, shape index: {}]
  %s2 = inlined_call_operand.vmem [shape: f32[2,128], index: 2, kind: output, shape index: {}]
  %s3 = sld [smem:[#allocation0]]
  $region18: #{perception_forward.1} parent=0
    _
  %s5 = ssub.s32 1, %s3
  %s6 = scalar_select 0, %s5, %s3
  // Predicated region
  $region2: #{perception_forward.1} parent=0 // pred_check
    _
  $region3: #{perception_forward.1} parent=0 // pred_check_branch
    %8 = sbr.rel (0) target = $region5
  $region4: #{perception_forward.1} parent=0 // pred_region
    _
  $region5: #{perception_forward.1} parent=0 // pred_fallthru
    _
  // Predicated region
  $region6: #{perception_forward.1} parent=0 // pred_check
    _
  $region7: #{perception_forward.1} parent=0 // pred_check_branch
    %10 = sbr.rel (0) target = $region9
  $region8: #{perception_forward.1} parent=0 // pred_region
    _
  $region9: #{perception_forward.1} parent=0 // pred_fallthru
    _
  %v11 = vld [vmem:[%s0] sm:$0x3]
  %v12 = vld [vmem:[%s1] sm:$0xff]
  %14 = vset.pattern.permute.xlu0 0
  %15 = vperm.xlu0 %14, %v11
  %v16 = vpop.permute.xlu0 %15
  %v18 = vperm.slane %v12, 0
  %v19 = vmul.f32 %v16, %v18
  %20 = vset.pattern.permute.xlu0 1
  %21 = vperm.xlu0 %20, %v11
  %v22 = vpop.permute.xlu0 %21
  %v24 = vperm.slane %v12, 1
  %v25 = vmul.f32 %v22, %v24
  %v26 = vadd.f32 %v19, %v25
  %27 = vset.pattern.permute.xlu0 2
  %28 = vperm.xlu0 %27, %v11
  %v29 = vpop.permute.xlu0 %28
  %v31 = vperm.slane %v12, 2
  %v32 = vmul.f32 %v29, %v31
  %v33 = vadd.f32 %v26, %v32
  %34 = vset.pattern.permute.xlu0 3
  %35 = vperm.xlu0 %34, %v11
  %v36 = vpop.permute.xlu0 %35
  %v38 = vperm.slane %v12, 3
  %v39 = vmul.f32 %v36, %v38
  %v40 = vadd.f32 %v33, %v39
  %41 = vset.pattern.permute.xlu0 4
  %42 = vperm.xlu0 %41, %v11
  %v43 = vpop.permute.xlu0 %42
  %v45 = vperm.slane %v12, 4
  %v46 = vmul.f32 %v43, %v45
  %v47 = vadd.f32 %v40, %v46
  %48 = vset.pattern.permute.xlu0 5
  %49 = vperm.xlu0 %48, %v11
  %v50 = vpop.permute.xlu0 %49
  %v52 = vperm.slane %v12, 5
  %v53 = vmul.f32 %v50, %v52
  %v54 = vadd.f32 %v47, %v53
  %55 = vset.pattern.permute.xlu0 6
  %56 = vperm.xlu0 %55, %v11
  %v57 = vpop.permute.xlu0 %56
  %v59 = vperm.slane %v12, 6
  %v60 = vmul.f32 %v57, %v59
  %v61 = vadd.f32 %v54, %v60
  %62 = vset.pattern.permute.xlu0 7
  %63 = vperm.xlu0 %62, %v11
  %v64 = vpop.permute.xlu0 %63
  %v66 = vperm.slane %v12, 7
  %v67 = vmul.f32 %v64, %v66
  %v68 = vadd.f32 %v61, %v67
  %69 = vst [vmem:[%s2] sm:$0x3] %v68
  // Predicated region
  $region10: #{perception_forward.1} parent=0 // pred_check
    _
  $region11: #{perception_forward.1} parent=0 // pred_check_branch
    %71 = sbr.rel (0) target = $region13
  $region12: #{perception_forward.1} parent=0 // pred_region
    _
  $region13: #{perception_forward.1} parent=0 // pred_fallthru
    _
  // Predicated region
  $region14: #{perception_forward.1} parent=0 // pred_check
    _
  $region15: #{perception_forward.1} parent=0 // pred_check_branch
    %73 = sbr.rel (0) target = $region17
  $region16: #{perception_forward.1} parent=0 // pred_region
    _
  $region17: #{perception_forward.1} parent=0 // pred_fallthru
    _

</llo_original>
